<compile_context>
chip_gen: v7x
topology: tpu7x:2x2x1
jax: 0.10.0
libtpu: 0.0.40
codegen_flags: <defaults>
</compile_context>

<pallas_src>
import functools

import jax
import jax.numpy as jnp
from jax.experimental import pallas as pl
from jax.experimental.pallas import tpu as pltpu

STATE_DIM = 17    # Walker2d-v3 observation_space.shape[0]
ACTION_DIM = 6    # Walker2d-v3 action_space.shape[0]
H1 = 128
H2 = 64


def _round_up(x, m):
    return ((x + m - 1) // m) * m


def qnetwork_kernel(x_ref, w1_ref, b1_ref, w2_ref, b2_ref, w3_ref, b3_ref, o_ref):
    # In-kernel cast of the activation stream to the compute dtype (no-op for f32
    # params); hidden under MXU work, avoids a separate XLA convert pass.
    x = x_ref[...].astype(w1_ref.dtype)
    # fc1 + relu  (bf16 x bf16 -> f32 accumulate on the MXU; epilogue in f32)
    h1 = jnp.dot(x, w1_ref[...], preferred_element_type=jnp.float32)
    h1 = jnp.maximum(h1 + b1_ref[...], 0.0)
    # fc2 + relu
    h2 = jnp.dot(h1.astype(w2_ref.dtype), w2_ref[...],
                 preferred_element_type=jnp.float32)
    h2 = jnp.maximum(h2 + b2_ref[...], 0.0)
    # fc3 (no activation)
    out = jnp.dot(h2.astype(w3_ref.dtype), w3_ref[...],
                  preferred_element_type=jnp.float32)
    o_ref[...] = (out + b3_ref[...]).astype(o_ref.dtype)


@functools.partial(jax.jit, static_argnames=("block_b",))
def qnetwork_forward(state, prepared_params, *, block_b=4096):
    """state: (B, STATE_DIM) f32.  prepared_params: from prepare_params().
    Returns (B, ACTION_DIM) f32 Q-values."""
    w1, b1, w2, b2, w3, b3 = prepared_params
    B = state.shape[0]

    # Batch tile: large (amortizes per-grid-step overhead), 8-row aligned, never
    # much larger than the batch.  For big batches force >=2 grid steps so the
    # software pipeline overlaps DMA with compute (and v7x can shard the axis).
    tb = min(block_b, _round_up(B, 8))
    if B >= 256 and pl.cdiv(B, tb) < 2:
        tb = _round_up(pl.cdiv(B, 2), 8)
    grid = (pl.cdiv(B, tb),)

    # Weights/biases: full-array blocks with a constant index_map -> fetched once
    # and kept resident in VMEM across all batch tiles.
    resident = lambda shape: pl.BlockSpec(shape, lambda i: (0, 0))

    param_bytes = sum(int(p.size) * p.dtype.itemsize for p in prepared_params)
    cost = pl.CostEstimate(
        flops=2 * B * (STATE_DIM * H1 + H1 * H2 + H2 * ACTION_DIM),
        transcendentals=0,
        bytes_accessed=B * STATE_DIM * state.dtype.itemsize
        + B * ACTION_DIM * 4
        + param_bytes,
    )

    out = pl.pallas_call(
        qnetwork_kernel,
        out_shape=jax.ShapeDtypeStruct((B, ACTION_DIM), jnp.float32),
        grid=grid,
        in_specs=[
            pl.BlockSpec((tb, STATE_DIM), lambda i: (i, 0)),   # x: batch-tiled
            resident(w1.shape), resident(b1.shape),
            resident(w2.shape), resident(b2.shape),
            resident(w3.shape), resident(b3.shape),
        ],
        out_specs=pl.BlockSpec((tb, ACTION_DIM), lambda i: (i, 0)),
        compiler_params=pltpu.CompilerParams(
            dimension_semantics=("parallel",),
            vmem_limit_bytes=32 * 1024 * 1024,   # safe on v5e/v6e/v7x scoped VMEM
        ),
        cost_estimate=cost,
    )(state, w1, b1, w2, b2, w3, b3)
    return out


def init_params(key):
    """Deterministic synthetic f32 params; shapes match nn.Linear layers (transposed)."""
    ks = jax.random.split(key, 6)

    def lin(kw, kb, fan_in, fan_out):
        # uniform(-1/sqrt(fan_in), 1/sqrt(fan_in)) like PyTorch default init
        bound = 1.0 / jnp.sqrt(jnp.float32(fan_in))
        w = jax.random.uniform(kw, (fan_in, fan_out), jnp.float32, -bound, bound)
        b = jax.random.uniform(kb, (1, fan_out), jnp.float32, -bound, bound)
        return w, b

    w1, b1 = lin(ks[0], ks[1], STATE_DIM, H1)
    w2, b2 = lin(ks[2], ks[3], H1, H2)
    w3, b3 = lin(ks[4], ks[5], H2, ACTION_DIM)
    return (w1, b1, w2, b2, w3, b3)


def prepare_params(params, compute_dtype=jnp.bfloat16):
    """Cast once (outside the per-step forward): weights to the MXU compute dtype,
    biases to f32 for the VPU epilogue."""
    w1, b1, w2, b2, w3, b3 = params
    return (w1.astype(compute_dtype), b1.astype(jnp.float32),
            w2.astype(compute_dtype), b2.astype(jnp.float32),
            w3.astype(compute_dtype), b3.astype(jnp.float32))


def reference_forward_fp32(state, params):
    w1, b1, w2, b2, w3, b3 = params
    x = jnp.maximum(state @ w1 + b1, 0.0)
    x = jnp.maximum(x @ w2 + b2, 0.0)
    return x @ w3 + b3


def reference_forward_matched(state, prepared_params):
    """Same mixed-precision recipe as the kernel (bf16 streams, f32 accumulate)."""
    w1, b1, w2, b2, w3, b3 = prepared_params
    c = w1.dtype
    x = state.astype(c)
    h1 = jnp.maximum(
        jnp.dot(x, w1, preferred_element_type=jnp.float32) + b1, 0.0)
    h2 = jnp.maximum(
        jnp.dot(h1.astype(c), w2, preferred_element_type=jnp.float32) + b2, 0.0)
    return jnp.dot(h2.astype(c), w3, preferred_element_type=jnp.float32) + b3


if __name__ == "__main__":
    key = jax.random.PRNGKey(0)
    k_params, k_state1, k_state2, k_state3 = jax.random.split(key, 4)
    params = init_params(k_params)                 # f32, PyTorch-style
    bf16_params = prepare_params(params)           # cast once, reused every call
    f32_params = prepare_params(params, jnp.float32)

    # Small batch (single grid step).
    B1 = 8
    state1 = jax.random.normal(k_state1, (B1, STATE_DIM), dtype=jnp.float32)
    out1 = jax.block_until_ready(qnetwork_forward(state1, bf16_params))
    assert out1.shape == (B1, ACTION_DIM)
    assert jnp.allclose(out1, reference_forward_matched(state1, bf16_params),
                        atol=1e-4, rtol=1e-4)
    assert jnp.allclose(out1, reference_forward_fp32(state1, params),
                        atol=3e-2, rtol=3e-2)

    # Non-multiple-of-8 batch exercises the partial final block (no pad/slice).
    B2 = 37
    state2 = jax.random.normal(k_state2, (B2, STATE_DIM), dtype=jnp.float32)
    out2 = jax.block_until_ready(qnetwork_forward(state2, bf16_params))
    assert out2.shape == (B2, ACTION_DIM)
    assert jnp.allclose(out2, reference_forward_matched(state2, bf16_params),
                        atol=1e-4, rtol=1e-4)

    # Multi-step grid (>=2 pipeline steps) plus a partial final block.
    B3 = 300
    state3 = jax.random.normal(k_state3, (B3, STATE_DIM), dtype=jnp.float32)
    out3 = jax.block_until_ready(qnetwork_forward(state3, bf16_params))
    assert out3.shape == (B3, ACTION_DIM)
    assert jnp.allclose(out3, reference_forward_matched(state3, bf16_params),
                        atol=1e-4, rtol=1e-4)

    # Full-f32 path matches the PyTorch-style f32 reference tightly.
    out1_f32 = jax.block_until_ready(qnetwork_forward(state1, f32_params))
    assert jnp.allclose(out1_f32, reference_forward_fp32(state1, params),
                        atol=1e-4, rtol=1e-4)

    print("KERNEL_OK")
</pallas_src>

<mosaic_0001>
module attributes {stable_mosaic.version = 11 : i64} {
  func.func @qnetwork_kernel(%arg0: i32, %arg1: memref<8x17xf32, #tpu.memory_space<vmem>>, %arg2: memref<17x128xbf16, #tpu.memory_space<vmem>>, %arg3: memref<1x128xf32, #tpu.memory_space<vmem>>, %arg4: memref<128x64xbf16, #tpu.memory_space<vmem>>, %arg5: memref<1x64xf32, #tpu.memory_space<vmem>>, %arg6: memref<64x6xbf16, #tpu.memory_space<vmem>>, %arg7: memref<1x6xf32, #tpu.memory_space<vmem>>, %arg8: memref<8x6xf32, #tpu.memory_space<vmem>>) attributes {dimension_semantics = [#tpu.dimension_semantics<parallel>], iteration_bounds = array<i64: 1>, scalar_prefetch = 0 : i64, scratch_operands = 0 : i64, tpu.core_type = #tpu.core_type<tc>, window_params = [{transform_indices = @transform_0, window_bounds = array<i64: 8, 17>}, {pipeline_mode = #tpu.pipeline_mode<synchronous>, transform_indices = @transform_1, window_bounds = array<i64: 17, 128>}, {pipeline_mode = #tpu.pipeline_mode<synchronous>, transform_indices = @transform_2, window_bounds = array<i64: 1, 128>}, {pipeline_mode = #tpu.pipeline_mode<synchronous>, transform_indices = @transform_3, window_bounds = array<i64: 128, 64>}, {pipeline_mode = #tpu.pipeline_mode<synchronous>, transform_indices = @transform_4, window_bounds = array<i64: 1, 64>}, {pipeline_mode = #tpu.pipeline_mode<synchronous>, transform_indices = @transform_5, window_bounds = array<i64: 64, 6>}, {pipeline_mode = #tpu.pipeline_mode<synchronous>, transform_indices = @transform_6, window_bounds = array<i64: 1, 6>}, {transform_indices = @transform_7, window_bounds = array<i64: 8, 6>}]} {
    %c0 = arith.constant 0 : index
    %c0_0 = arith.constant 0 : index
    %0 = vector.load %arg1[%c0, %c0_0] : memref<8x17xf32, #tpu.memory_space<vmem>>, vector<8x17xf32>
    %1 = arith.truncf %0 : vector<8x17xf32> to vector<8x17xbf16>
    %c0_1 = arith.constant 0 : index
    %c0_2 = arith.constant 0 : index
    %2 = vector.load %arg2[%c0_1, %c0_2] : memref<17x128xbf16, #tpu.memory_space<vmem>>, vector<17x128xbf16>
    %cst = arith.constant dense<0.000000e+00> : vector<8x128xf32>
    %3 = tpu.matmul %1, %2, %cst {dimension_numbers = #tpu.dot_dimension_numbers<[1], [0], [0], [1], [0, 0, 1, 1], [], []>} : vector<8x17xbf16>, vector<17x128xbf16>, vector<8x128xf32> -> vector<8x128xf32>
    %c0_3 = arith.constant 0 : index
    %c0_4 = arith.constant 0 : index
    %4 = vector.load %arg3[%c0_3, %c0_4] : memref<1x128xf32, #tpu.memory_space<vmem>>, vector<1x128xf32>
    %5 = vector.broadcast %4 : vector<1x128xf32> to vector<8x128xf32>
    %6 = arith.addf %3, %5 : vector<8x128xf32>
    %cst_5 = arith.constant 0.000000e+00 : f32
    %7 = vector.broadcast %cst_5 : f32 to vector<8x128xf32>
    %8 = arith.maximumf %6, %7 : vector<8x128xf32>
    %9 = arith.truncf %8 : vector<8x128xf32> to vector<8x128xbf16>
    %c0_6 = arith.constant 0 : index
    %c0_7 = arith.constant 0 : index
    %10 = vector.load %arg4[%c0_6, %c0_7] : memref<128x64xbf16, #tpu.memory_space<vmem>>, vector<128x64xbf16>
    %cst_8 = arith.constant dense<0.000000e+00> : vector<8x64xf32>
    %11 = tpu.matmul %9, %10, %cst_8 {dimension_numbers = #tpu.dot_dimension_numbers<[1], [0], [0], [1], [0, 0, 1, 1], [], []>} : vector<8x128xbf16>, vector<128x64xbf16>, vector<8x64xf32> -> vector<8x64xf32>
    %c0_9 = arith.constant 0 : index
    %c0_10 = arith.constant 0 : index
    %12 = vector.load %arg5[%c0_9, %c0_10] : memref<1x64xf32, #tpu.memory_space<vmem>>, vector<1x64xf32>
    %13 = vector.broadcast %12 : vector<1x64xf32> to vector<8x64xf32>
    %14 = arith.addf %11, %13 : vector<8x64xf32>
    %cst_11 = arith.constant 0.000000e+00 : f32
    %15 = vector.broadcast %cst_11 : f32 to vector<8x64xf32>
    %16 = arith.maximumf %14, %15 : vector<8x64xf32>
    %17 = arith.truncf %16 : vector<8x64xf32> to vector<8x64xbf16>
    %c0_12 = arith.constant 0 : index
    %c0_13 = arith.constant 0 : index
    %18 = vector.load %arg6[%c0_12, %c0_13] : memref<64x6xbf16, #tpu.memory_space<vmem>>, vector<64x6xbf16>
    %cst_14 = arith.constant dense<0.000000e+00> : vector<8x6xf32>
    %19 = tpu.matmul %17, %18, %cst_14 {dimension_numbers = #tpu.dot_dimension_numbers<[1], [0], [0], [1], [0, 0, 1, 1], [], []>} : vector<8x64xbf16>, vector<64x6xbf16>, vector<8x6xf32> -> vector<8x6xf32>
    %c0_15 = arith.constant 0 : index
    %c0_16 = arith.constant 0 : index
    %20 = vector.load %arg7[%c0_15, %c0_16] : memref<1x6xf32, #tpu.memory_space<vmem>>, vector<1x6xf32>
    %21 = vector.broadcast %20 : vector<1x6xf32> to vector<8x6xf32>
    %22 = arith.addf %19, %21 : vector<8x6xf32>
    %c0_17 = arith.constant 0 : index
    %c0_18 = arith.constant 0 : index
    %23 = vector.load %arg8[%c0_17, %c0_18] : memref<8x6xf32, #tpu.memory_space<vmem>>, vector<8x6xf32>
    tpu.vector_store %arg8[%c0_17, %c0_18], %22 {strides = array<i32>} : memref<8x6xf32, #tpu.memory_space<vmem>>, vector<8x6xf32>,
    return
  }
  func.func @transform_0(%arg0: i32) -> (i32, i32) {
    %c0_i32 = arith.constant 0 : i32
    %c0_i32_0 = arith.constant 0 : i32
    return %arg0, %c0_i32 : i32, i32
  }
  func.func @transform_1(%arg0: i32) -> (i32, i32) {
    %c0_i32 = arith.constant 0 : i32
    %c0_i32_0 = arith.constant 0 : i32
    %c0_i32_1 = arith.constant 0 : i32
    return %c0_i32, %c0_i32_0 : i32, i32
  }
  func.func @transform_2(%arg0: i32) -> (i32, i32) {
    %c0_i32 = arith.constant 0 : i32
    %c0_i32_0 = arith.constant 0 : i32
    %c0_i32_1 = arith.constant 0 : i32
    return %c0_i32, %c0_i32_0 : i32, i32
  }
  func.func @transform_3(%arg0: i32) -> (i32, i32) {
    %c0_i32 = arith.constant 0 : i32
    %c0_i32_0 = arith.constant 0 : i32
    %c0_i32_1 = arith.constant 0 : i32
    return %c0_i32, %c0_i32_0 : i32, i32
  }
  func.func @transform_4(%arg0: i32) -> (i32, i32) {
    %c0_i32 = arith.constant 0 : i32
    %c0_i32_0 = arith.constant 0 : i32
    %c0_i32_1 = arith.constant 0 : i32
    return %c0_i32, %c0_i32_0 : i32, i32
  }
  func.func @transform_5(%arg0: i32) -> (i32, i32) {
    %c0_i32 = arith.constant 0 : i32
    %c0_i32_0 = arith.constant 0 : i32
    %c0_i32_1 = arith.constant 0 : i32
    return %c0_i32, %c0_i32_0 : i32, i32
  }
  func.func @transform_6(%arg0: i32) -> (i32, i32) {
    %c0_i32 = arith.constant 0 : i32
    %c0_i32_0 = arith.constant 0 : i32
    %c0_i32_1 = arith.constant 0 : i32
    return %c0_i32, %c0_i32_0 : i32, i32
  }
  func.func @transform_7(%arg0: i32) -> (i32, i32) {
    %c0_i32 = arith.constant 0 : i32
    %c0_i32_0 = arith.constant 0 : i32
    return %arg0, %c0_i32 : i32, i32
  }
}

</mosaic_0001>

<llo_original>
// kernel: qnetwork_forward.1
$region0: #{qnetwork_forward.1}
  #allocation0 [shape = 'u32[]', space=smem, size = 0x4, offset = 0x4, fixed_abs, tag = 'smem constant byte address 0x4 - core index']
  #allocation1 [shape = 'u32[144,128]{1,0:T(1,128)}', space=vmem, size = 0x12000, scoped, tag = 'internal scratch']
  %s0 = inlined_call_operand.vmem [shape: f32[8,17], index: 0, kind: input, shape index: {}]
  %s1 = inlined_call_operand.vmem [shape: bf16[17,128], index: 1, kind: input, shape index: {}]
  %s2 = inlined_call_operand.vmem [shape: f32[1,128], index: 2, kind: input, shape index: {}]
  %s3 = inlined_call_operand.vmem [shape: bf16[128,64], index: 3, kind: input, shape index: {}]
  %s4 = inlined_call_operand.vmem [shape: f32[1,64], index: 4, kind: input, shape index: {}]
  %s5 = inlined_call_operand.vmem [shape: bf16[64,6], index: 5, kind: input, shape index: {}]
  %s6 = inlined_call_operand.vmem [shape: f32[1,6], index: 6, kind: input, shape index: {}]
  %s7 = inlined_call_operand.hbm [shape: f32[8,6], index: 7, kind: output, shape index: {}]
  %s8 = sld [smem:[#allocation0]]
  $region38: #{qnetwork_forward.1} parent=0
    _
  %s10 = ssub.s32 1, %s8
  %s11 = scalar_select 0, %s10, %s8
  $region1: #{qnetwork_forward.1} parent=0
    #allocation2 [shape = 'u8[4096]{0}', space=vmem, size = 0x1000, scoped, tag = 'output window, operand 0, single buffered']
    #allocation3 [shape = 's32[1]{0}', space=sflag, size = 0x4, scoped, tag = 'scoped memory for qnetwork_forward.1']
    %12 = vsyncpa [#allocation3], 0
    // Predicated region
    $region2: #{qnetwork_forward.1} parent=1 // pred_check
      _
    $region3: #{qnetwork_forward.1} parent=1 // pred_check_branch
      %14 = sbr.rel (0) target = $region5
    $region4: #{qnetwork_forward.1} parent=1 // pred_region
      _
    $region5: #{qnetwork_forward.1} parent=1 // pred_fallthru
      _
    // Predicated region
    $region6: #{qnetwork_forward.1} parent=1 // pred_check
      _
    $region7: #{qnetwork_forward.1} parent=1 // pred_check_branch
      %16 = sbr.rel (0) target = $region9
    $region8: #{qnetwork_forward.1} parent=1 // pred_region
      _
    $region9: #{qnetwork_forward.1} parent=1 // pred_fallthru
      _
    // Predicated region
    $region10: #{qnetwork_forward.1} parent=1 // pred_check
      _
    $region11: #{qnetwork_forward.1} parent=1 // pred_check_branch
      %18 = sbr.rel (0) target = $region13
    $region12: #{qnetwork_forward.1} parent=1 // pred_region
      _
    $region13: #{qnetwork_forward.1} parent=1 // pred_fallthru
      _
    // Predicated region
    $region14: #{qnetwork_forward.1} parent=1 // pred_check
      _
    $region15: #{qnetwork_forward.1} parent=1 // pred_check_branch
      %20 = sbr.rel (0) target = $region17
    $region16: #{qnetwork_forward.1} parent=1 // pred_region
      _
    $region17: #{qnetwork_forward.1} parent=1 // pred_fallthru
      _
    // Predicated region
    $region18: #{qnetwork_forward.1} parent=1 // pred_check
      _
    $region19: #{qnetwork_forward.1} parent=1 // pred_check_branch
      %22 = sbr.rel (0) target = $region21
    $region20: #{qnetwork_forward.1} parent=1 // pred_region
      _
    $region21: #{qnetwork_forward.1} parent=1 // pred_fallthru
      _
    // Predicated region
    $region22: #{qnetwork_forward.1} parent=1 // pred_check
      _
    $region23: #{qnetwork_forward.1} parent=1 // pred_check_branch
      %24 = sbr.rel (0) target = $region25
    $region24: #{qnetwork_forward.1} parent=1 // pred_region
      _
    $region25: #{qnetwork_forward.1} parent=1 // pred_fallthru
      _
    // Predicated region
    $region26: #{qnetwork_forward.1} parent=1 // pred_check
      _
    $region27: #{qnetwork_forward.1} parent=1 // pred_check_branch
      %26 = sbr.rel (0) target = $region29
    $region28: #{qnetwork_forward.1} parent=1 // pred_region
      _
    $region29: #{qnetwork_forward.1} parent=1 // pred_fallthru
      _
    %v28 = vld [vmem:[%s0] sm:$0xff]
    %v29 = vpack.c.bf16 %v28, %v28
    %v30 = vld [vmem:[%s1] sm:$0xf]
    %v31 = vld [vmem:[%s1 + $0x4] sm:$0xf]
    %v32 = vld [vmem:[%s1 + $0x8] sm:$0x1]
    %v33 = vld [vmem:[%s2] sm:$0x1]
    %v35 = vlaneseq
    %v36 = vshrl.u32 %v35, 7
    %v37 = vsub.s32 0, %v36
    %v38 = vrot.slane %v33, %v37
    %v43 = vunpack.c.l.b16 %v30
    %v44 = vunpack.c.l.b16 %v31
    %v45 = vunpack.c.l.b16 %v32
    %v46 = vpack.c.b16 %v44, %v43
    %v47 = vpack.c.b16 %v45, %v45
    %vm49 = vcmask 138240
    %v51 = vsel %vm49, %v29, 0
    %vm53 = vcmask 1040384
    %v54 = vsel 0, 4294967295, 65535
    %v55 = vsel %vm53, %v54, 0
    %v57 = vand.u32 %v47, %v55
    %59 = vmatprep.subr.bf16.mxu0 0
    %60 = vmatpush1.bf16.msra.mxu0 %v46
    %61 = vmatprep.subr.bf16.mxu0 0
    %62 = vmatpush1.bf16.msra.mxu0 %v57
    %63 = vmatprep.subr.bf16.mxu0 0
    %64 = vmatpush1.bf16.msra.mxu0 0
    %65 = vmatprep.subr.bf16.mxu0 0
    %66 = vmatpush1.bf16.msra.mxu0 0
    %67 = vmatprep.subr.bf16.mxu0 0
    %68 = vmatpush1.bf16.msra.mxu0 0
    %69 = vmatprep.subr.bf16.mxu0 0
    %70 = vmatpush1.bf16.msra.mxu0 0
    %71 = vmatprep.subr.bf16.mxu0 0
    %72 = vmatpush1.bf16.msra.mxu0 0
    %73 = vmatprep.subr.bf16.mxu0 0
    %74 = vmatpush1.bf16.msra.mxu0 0
    %75 = vmatprep.subr.bf16.mxu0 0
    %76 = vmatpush1.bf16.msra.mxu0 0
    %77 = vmatprep.subr.bf16.mxu0 0
    %78 = vmatpush1.bf16.msra.mxu0 0
    %79 = vmatprep.subr.bf16.mxu0 0
    %80 = vmatpush1.bf16.msra.mxu0 0
    %81 = vmatprep.subr.bf16.mxu0 0
    %82 = vmatpush1.bf16.msra.mxu0 0
    %83 = vmatprep.subr.bf16.mxu0 0
    %84 = vmatpush1.bf16.msra.mxu0 0
    %85 = vmatprep.subr.bf16.mxu0 0
    %86 = vmatpush1.bf16.msra.mxu0 0
    %87 = vmatprep.subr.bf16.mxu0 0
    %88 = vmatpush1.bf16.msra.mxu0 0
    %89 = vmatprep.subr.bf16.mxu0 0
    %90 = vmatpush1.bf16.msra.mxu0 0
    %91 = vmatprep.mubr.bf16.mxu0 0
    %92 = vmatmul.mubr.bf16.gmra.mrb[0].mxu0 %v51
    %v93 = vpop.f32.mrb[0].mxu0
    %v94 = vadd.f32 %v38, %v93
    %v95 = vpop.f32.mrb[0].mxu0
    %v96 = vpop.f32.mrb[0].mxu0
    %v97 = vpop.f32.mrb[0].mxu0
    %98 = vdwg.mxu0
    %v99 = vmax.f32 %v94, 0.0
    %v100 = vpack.c.bf16 %v99, %v99
    %v101 = vld [vmem:[%s3] sm:$0xf]
    %v102 = vld [vmem:[%s3 + $0x4] sm:$0xf]
    %v103 = vld [vmem:[%s3 + $0x8] sm:$0xf]
    %v104 = vld [vmem:[%s3 + $0xc] sm:$0xf]
    %v105 = vld [vmem:[%s3 + $0x10] sm:$0xf]
    %v106 = vld [vmem:[%s3 + $0x14] sm:$0xf]
    %v107 = vld [vmem:[%s3 + $0x18] sm:$0xf]
    %v108 = vld [vmem:[%s3 + $0x1c] sm:$0xf]
    %v109 = vld [vmem:[%s3 + $0x20] sm:$0xf]
    %v110 = vld [vmem:[%s3 + $0x24] sm:$0xf]
    %v111 = vld [vmem:[%s3 + $0x28] sm:$0xf]
    %v112 = vld [vmem:[%s3 + $0x2c] sm:$0xf]
    %v113 = vld [vmem:[%s3 + $0x30] sm:$0xf]
    %v114 = vld [vmem:[%s3 + $0x34] sm:$0xf]
    %v115 = vld [vmem:[%s3 + $0x38] sm:$0xf]
    %v116 = vld [vmem:[%s3 + $0x3c] sm:$0xf]
    %v117 = vld [vmem:[%s4] sm:$0x1]
    %v119 = vlaneseq
    %v120 = vshrl.u32 %v119, 7
    %v121 = vsub.s32 0, %v120
    %v122 = vrot.slane %v117, %v121
    %v140 = vunpack.c.l.b16 %v101
    %v141 = vunpack.c.l.b16 %v102
    %v142 = vunpack.c.l.b16 %v103
    %v143 = vunpack.c.l.b16 %v104
    %v144 = vunpack.c.l.b16 %v105
    %v145 = vunpack.c.l.b16 %v106
    %v146 = vunpack.c.l.b16 %v107
    %v147 = vunpack.c.l.b16 %v108
    %v148 = vunpack.c.l.b16 %v109
    %v149 = vunpack.c.l.b16 %v110
    %v150 = vunpack.c.l.b16 %v111
    %v151 = vunpack.c.l.b16 %v112
    %v152 = vunpack.c.l.b16 %v113
    %v153 = vunpack.c.l.b16 %v114
    %v154 = vunpack.c.l.b16 %v115
    %v155 = vunpack.c.l.b16 %v116
    %v156 = vpack.c.b16 %v141, %v140
    %v157 = vpack.c.b16 %v143, %v142
    %v158 = vpack.c.b16 %v145, %v144
    %v159 = vpack.c.b16 %v147, %v146
    %v160 = vpack.c.b16 %v149, %v148
    %v161 = vpack.c.b16 %v151, %v150
    %v162 = vpack.c.b16 %v153, %v152
    %v163 = vpack.c.b16 %v155, %v154
    %172 = vmatprep.subr.bf16.mxu0 0
    %173 = vmatpush1.bf16.msra.mxu0 %v156
    %174 = vmatprep.subr.bf16.mxu0 0
    %175 = vmatpush1.bf16.msra.mxu0 %v157
    %176 = vmatprep.subr.bf16.mxu0 0
    %177 = vmatpush1.bf16.msra.mxu0 %v158
    %178 = vmatprep.subr.bf16.mxu0 0
    %179 = vmatpush1.bf16.msra.mxu0 %v159
    %180 = vmatprep.subr.bf16.mxu0 0
    %181 = vmatpush1.bf16.msra.mxu0 %v160
    %182 = vmatprep.subr.bf16.mxu0 0
    %183 = vmatpush1.bf16.msra.mxu0 %v161
    %184 = vmatprep.subr.bf16.mxu0 0
    %185 = vmatpush1.bf16.msra.mxu0 %v162
    %186 = vmatprep.subr.bf16.mxu0 0
    %187 = vmatpush1.bf16.msra.mxu0 %v163
    %188 = vmatprep.subr.bf16.mxu0 0
    %189 = vmatpush1.bf16.msra.mxu0 0
    %190 = vmatprep.subr.bf16.mxu0 0
    %191 = vmatpush1.bf16.msra.mxu0 0
    %192 = vmatprep.subr.bf16.mxu0 0
    %193 = vmatpush1.bf16.msra.mxu0 0
    %194 = vmatprep.subr.bf16.mxu0 0
    %195 = vmatpush1.bf16.msra.mxu0 0
    %196 = vmatprep.subr.bf16.mxu0 0
    %197 = vmatpush1.bf16.msra.mxu0 0
    %198 = vmatprep.subr.bf16.mxu0 0
    %199 = vmatpush1.bf16.msra.mxu0 0
    %200 = vmatprep.subr.bf16.mxu0 0
    %201 = vmatpush1.bf16.msra.mxu0 0
    %202 = vmatprep.subr.bf16.mxu0 0
    %203 = vmatpush1.bf16.msra.mxu0 0
    %204 = vmatprep.mubr.bf16.mxu0 0
    %205 = vmatmul.mubr.bf16.gmra.mrb[0].mxu0 %v100
    %v206 = vpop.f32.mrb[0].mxu0
    %v207 = vadd.f32 %v122, %v206
    %v208 = vpop.f32.mrb[0].mxu0
    %v209 = vpop.f32.mrb[0].mxu0
    %v210 = vpop.f32.mrb[0].mxu0
    %211 = vdwg.mxu0
    %v212 = vmax.f32 %v207, 0.0
    %v213 = vpack.c.bf16 %v212, %v212
    %v214 = vld [vmem:[%s5] sm:$0xf]
    %v215 = vld [vmem:[%s5 + $0x4] sm:$0xf]
    %v216 = vld [vmem:[%s5 + $0x8] sm:$0xf]
    %v217 = vld [vmem:[%s5 + $0xc] sm:$0xf]
    %v218 = vld [vmem:[%s5 + $0x10] sm:$0xf]
    %v219 = vld [vmem:[%s5 + $0x14] sm:$0xf]
    %v220 = vld [vmem:[%s5 + $0x18] sm:$0xf]
    %v221 = vld [vmem:[%s5 + $0x1c] sm:$0xf]
    %v222 = vld [vmem:[%s6] sm:$0x1]
    %v224 = vlaneseq
    %v225 = vshrl.u32 %v224, 7
    %v226 = vsub.s32 0, %v225
    %v227 = vrot.slane %v222, %v226
    %v237 = vunpack.c.l.b16 %v214
    %v238 = vunpack.c.l.b16 %v215
    %v239 = vunpack.c.l.b16 %v216
    %v240 = vunpack.c.l.b16 %v217
    %v241 = vunpack.c.l.b16 %v218
    %v242 = vunpack.c.l.b16 %v219
    %v243 = vunpack.c.l.b16 %v220
    %v244 = vunpack.c.l.b16 %v221
    %v245 = vpack.c.b16 %v238, %v237
    %v246 = vpack.c.b16 %v240, %v239
    %v247 = vpack.c.b16 %v242, %v241
    %v248 = vpack.c.b16 %v244, %v243
    %vm253 = vcmask 523264
    %v255 = vsel %vm253, %v213, 0
    %257 = vmatprep.subr.bf16.mxu0 0
    %258 = vmatpush1.bf16.msra.mxu0 %v245
    %259 = vmatprep.subr.bf16.mxu0 0
    %260 = vmatpush1.bf16.msra.mxu0 %v246
    %261 = vmatprep.subr.bf16.mxu0 0
    %262 = vmatpush1.bf16.msra.mxu0 %v247
    %263 = vmatprep.subr.bf16.mxu0 0
    %264 = vmatpush1.bf16.msra.mxu0 %v248
    %265 = vmatprep.subr.bf16.mxu0 0
    %266 = vmatpush1.bf16.msra.mxu0 0
    %267 = vmatprep.subr.bf16.mxu0 0
    %268 = vmatpush1.bf16.msra.mxu0 0
    %269 = vmatprep.subr.bf16.mxu0 0
    %270 = vmatpush1.bf16.msra.mxu0 0
    %271 = vmatprep.subr.bf16.mxu0 0
    %272 = vmatpush1.bf16.msra.mxu0 0
    %273 = vmatprep.subr.bf16.mxu0 0
    %274 = vmatpush1.bf16.msra.mxu0 0
    %275 = vmatprep.subr.bf16.mxu0 0
    %276 = vmatpush1.bf16.msra.mxu0 0
    %277 = vmatprep.subr.bf16.mxu0 0
    %278 = vmatpush1.bf16.msra.mxu0 0
    %279 = vmatprep.subr.bf16.mxu0 0
    %280 = vmatpush1.bf16.msra.mxu0 0
    %281 = vmatprep.subr.bf16.mxu0 0
    %282 = vmatpush1.bf16.msra.mxu0 0
    %283 = vmatprep.subr.bf16.mxu0 0
    %284 = vmatpush1.bf16.msra.mxu0 0
    %285 = vmatprep.subr.bf16.mxu0 0
    %286 = vmatpush1.bf16.msra.mxu0 0
    %287 = vmatprep.subr.bf16.mxu0 0
    %288 = vmatpush1.bf16.msra.mxu0 0
    %289 = vmatprep.mubr.bf16.mxu0 0
    %290 = vmatmul.mubr.bf16.gmra.mrb[0].mxu0 %v255
    %v291 = vpop.f32.mrb[0].mxu0
    %v292 = vadd.f32 %v227, %v291
    %v293 = vpop.f32.mrb[0].mxu0
    %v294 = vpop.f32.mrb[0].mxu0
    %v295 = vpop.f32.mrb[0].mxu0
    %296 = vdwg.mxu0
    %vm297 = vcmask 48128
    %298 = vst.msk [vmem:[#allocation2] sm:$0xff] %vm297, %v292
    // Predicated region
    $region30: #{qnetwork_forward.1} parent=1 // pred_check
      _
    $region31: #{qnetwork_forward.1} parent=1 // pred_check_branch
      %300 = sbr.rel (0) target = $region33
    $region32: #{qnetwork_forward.1} parent=1 // pred_region
      %s302 = ssub.s32 128, 128
      %303 = vsyncadd [#allocation3], %s302
      %s305 = sshll.u32 [#allocation2], 4
      %s306 = int_to_ptr.vmem [resolvable:$true] %s305
      %308 = dma.vmem_to_hbm [thread:$0]  %s306, 128, %s7, [#allocation3]
    $region33: #{qnetwork_forward.1} parent=1 // pred_fallthru
      _
    // Predicated region
    $region34: #{qnetwork_forward.1} parent=1 // pred_check
      _
    $region35: #{qnetwork_forward.1} parent=1 // pred_check_branch
      %310 = sbr.rel (0) target = $region37
    $region36: #{qnetwork_forward.1} parent=1 // pred_region
      %311 = dma.done [#allocation3], 128
    $region37: #{qnetwork_forward.1} parent=1 // pred_fallthru
      _
    %312 = vsyncpa [#allocation3], 1

</llo_original>
